<compile_context>
chip_gen: v6e
topology: v6e:2x2x1
jax: 0.10.0
libtpu: 0.0.40
codegen_flags: <defaults>
</compile_context>

<pallas_src>
import functools
import math

import jax
import jax.numpy as jnp
from jax import lax
from jax.experimental import pallas as pl
from jax.experimental.pallas import tpu as pltpu


# ---------------------------------------------------------------------------
# Hardware introspection (generation + VMEM capacity) for tile sizing.
# ---------------------------------------------------------------------------
def _tpu_generation():
    try:
        kind = jax.devices()[0].device_kind.lower()
    except Exception:
        return "unknown"
    if "v7" in kind or "7x" in kind:
        return "v7x"
    if "v6" in kind:
        return "v6e"
    if "v5e" in kind or "v5 lite" in kind or "v5lite" in kind:
        return "v5e"
    return "unknown"


def _vmem_budget(gen):
    """Returns (scoped vmem limit, double-buffered tile budget) in bytes."""
    if gen == "v7x":
        # 64 MiB physical per TensorCore.
        return 48 << 20, 36 << 20
    cap = None
    try:
        cap = int(pltpu.get_tpu_info().vmem_capacity_bytes)
    except Exception:
        cap = None
    if (cap is not None and cap >= (120 << 20)) or gen in ("v5e", "v6e"):
        # 128 MiB physical (v5e/v6e); scoped default is far smaller, so raise it.
        return 100 << 20, 80 << 20
    # Unknown chip: stay v7x-safe.
    return 48 << 20, 36 << 20


# ---------------------------------------------------------------------------
# Tile selection.
# ---------------------------------------------------------------------------
def _select_tiles_k_resident(M, N, K, x_isz, w_isz, o_isz, budget, gen):
    """Pick (tm, tn) with K fully resident.  tn-first, tm=M fast path."""
    tn_step = 256 if gen in ("v6e", "v7x") else 128   # MXU is 256x256 on v6e/v7x
    n_cands = [c for c in (8192, 4096, 2048, 1024, 512, 256, 128)
               if (c % tn_step == 0 or c == 128) and N % c == 0]
    if not n_cands:
        n_cands = [N]                                  # ragged vocab fallback
    m_cands = [c for c in (1024, 512, 256, 128, 64, 32, 16, 8) if M % c == 0]

    def fits(tm, tn):
        return 2 * (tm * K * x_isz + tn * K * w_isz + tm * tn * o_isz) <= budget

    # Fast path: whole activation resident -> x is DMA'd from HBM exactly once.
    for tn in n_cands:
        if fits(M, tn):
            return M, tn
    # Otherwise maximize tn first (the x re-stream scales with N/tn and is
    # independent of tm), then tm.
    for tn in n_cands:
        for tm in m_cands:
            if fits(tm, tn):
                return tm, tn
    return None


def _select_tiles_k_tiled(M, N, K, x_isz, w_isz, o_isz, budget, gen):
    """Pick (tm, tn, tk) for the K-tiled (accumulator) path."""
    tn_step = 256 if gen in ("v6e", "v7x") else 128
    n_cands = [c for c in (4096, 2048, 1024, 512, 256, 128)
               if (c % tn_step == 0 or c == 128) and N % c == 0]
    m_cands = [c for c in (512, 256, 128, 64, 32, 16, 8) if M % c == 0] or [M]
    k_cands = [c for c in (2048, 1024, 512, 256, 128) if K % c == 0]
    if not n_cands or not k_cands:
        return None

    def fits(tm, tn, tk):
        dbl = 2 * (tm * tk * x_isz + tn * tk * w_isz + tm * tn * o_isz)
        return dbl + tm * tn * 4 <= budget             # + f32 accumulator scratch

    for tn in n_cands:
        for tm in m_cands:
            for tk in k_cands:
                if fits(tm, tn, tk):
                    return tm, tn, tk
    return None


# ---------------------------------------------------------------------------
# Kernels.
# ---------------------------------------------------------------------------
def _out_embds_kernel(x_ref, w_ref, o_ref):
    """One (tm, tn) logits tile, K fully resident.

    x_ref: (tm, K)  activation tile (already in the compute dtype)
    w_ref: (tn, K)  embedding rows in native layout (transpose folded into dot)
    o_ref: (tm, tn) output tile
    """
    o_ref[...] = lax.dot_general(
        x_ref[...],
        w_ref[...],
        dimension_numbers=(((1,), (1,)), ((), ())),    # contract K with K (x @ w.T)
        preferred_element_type=jnp.float32,
    ).astype(o_ref.dtype)


def _out_embds_kernel_ktiled(x_ref, w_ref, o_ref, acc_ref):
    """K-tiled variant: accumulate (tm, tn) partials over the innermost K axis."""
    @pl.when(pl.program_id(2) == 0)
    def _():
        acc_ref[...] = jnp.zeros_like(acc_ref)

    acc_ref[...] += lax.dot_general(
        x_ref[...],
        w_ref[...],
        dimension_numbers=(((1,), (1,)), ((), ())),
        preferred_element_type=jnp.float32,
    )

    @pl.when(pl.program_id(2) == pl.num_programs(2) - 1)
    def _():
        o_ref[...] = acc_ref[...].astype(o_ref.dtype)


# ---------------------------------------------------------------------------
# Wrapper.
# ---------------------------------------------------------------------------
@functools.partial(jax.jit, static_argnames=("vocab_size", "precision", "out_dtype"))
def out_embds_forward(x, embed_weight, vocab_size, precision="bf16", out_dtype=None):
    """Pallas implementation of OutEmbds.forward: x @ embed_weight[:vocab_size].T

    x:            (..., emb_dim)
    embed_weight: (full_vocab, emb_dim)   (nn.Embedding layout)
    precision:    "bf16" (default; bf16 MXU inputs, f32 accumulation) or "f32"
    returns:      (..., vocab_size) in `out_dtype` (default: x.dtype)
    """
    *lead, K = x.shape
    M = math.prod(lead) if lead else 1
    N = int(vocab_size)
    full_vocab = embed_weight.shape[0]
    out_dt = jnp.dtype(out_dtype) if out_dtype is not None else x.dtype

    x2d = x.reshape(M, K)                              # contiguous reshape, free
    w = embed_weight
    if precision == "bf16":
        # Cast ONCE here (outside the kernel), never per grid step.  In
        # production, keep the table resident in bf16 across calls so even
        # this one-time cast disappears; it halves the dominant N*K HBM
        # stream and the VMEM tile footprint.
        if x2d.dtype != jnp.bfloat16:
            x2d = x2d.astype(jnp.bfloat16)
        if w.dtype != jnp.bfloat16:
            w = w.astype(jnp.bfloat16)

    x_isz = jnp.dtype(x2d.dtype).itemsize
    w_isz = jnp.dtype(w.dtype).itemsize
    o_isz = jnp.dtype(out_dt).itemsize

    gen = _tpu_generation()
    vmem_limit, tile_budget = _vmem_budget(gen)

    kres = _select_tiles_k_resident(M, N, K, x_isz, w_isz, o_isz, tile_budget, gen)
    ktiles = None
    if kres is None or (K >= 4096 and (kres[0] < 128 or kres[1] < 1024)):
        # Large emb_dim: keeping K resident collapses the tiles; split K with
        # an f32 VMEM accumulator instead (K axis innermost, "arbitrary").
        ktiles = _select_tiles_k_tiled(M, N, K, x_isz, w_isz, o_isz, tile_budget, gen)
    if kres is None and ktiles is None:
        raise ValueError(
            "out_embds_forward: no tile configuration fits the VMEM budget "
            f"(M={M}, N={N}, K={K})")

    if ktiles is None:
        tm, tn = kres
        # v7x megacore: keep the outer (vocab) grid extent >= 2 and even so
        # both TensorCores get half the table instead of one idling / both
        # re-reading everything.
        if gen == "v7x" and tn % 256 == 0 and N % tn == 0:
            nblocks = N // tn
            if nblocks < 2 or nblocks % 2 == 1:
                tn //= 2

        wk = w
        if tn == N and N != full_vocab and N % 8 != 0:
            # Ragged vocab_size fallback: the weight block's sublane dim must
            # be a multiple of 8 or the full extent.  Rare path; one slice copy.
            # TODO(synk): handle ragged vocab_size with a masked final tile.
            wk = w[:N]

        # vocab axis OUTERMOST -> the big weight streams from HBM exactly once,
        # only the (small) activation re-streams N//tn times (once if tm == M).
        grid = (N // tn, M // tm)
        x_streams = 1 if tm == M else N // tn
        cost = pl.CostEstimate(
            flops=2 * M * N * K,
            transcendentals=0,
            bytes_accessed=(x_streams * M * K * x_isz
                            + N * K * w_isz + M * N * o_isz),
        )

        out2d = pl.pallas_call(
            _out_embds_kernel,
            out_shape=jax.ShapeDtypeStruct((M, N), out_dt),
            grid_spec=pltpu.PrefetchScalarGridSpec(
                num_scalar_prefetch=0,
                grid=grid,
                in_specs=[
                    # x tile: depends only on the inner (token) axis.
                    pl.BlockSpec((tm, K), lambda n, m: (m, 0)),
                    # weight tile: depends only on the outer (vocab) axis; rows
                    # >= vocab_size are simply never indexed by the grid.
                    pl.BlockSpec((tn, K), lambda n, m: (n, 0)),
                ],
                out_specs=pl.BlockSpec((tm, tn), lambda n, m: (m, n)),
            ),
            compiler_params=pltpu.CompilerParams(
                dimension_semantics=("parallel", "parallel"),
                vmem_limit_bytes=vmem_limit,
            ),
            cost_estimate=cost,
        )(x2d, wk)
    else:
        tm, tn, tk = ktiles
        grid = (N // tn, M // tm, K // tk)             # K innermost (reduction)
        cost = pl.CostEstimate(
            flops=2 * M * N * K,
            transcendentals=0,
            bytes_accessed=((N // tn) * M * K * x_isz
                            + (M // tm) * N * K * w_isz + M * N * o_isz),
        )
        out2d = pl.pallas_call(
            _out_embds_kernel_ktiled,
            out_shape=jax.ShapeDtypeStruct((M, N), out_dt),
            grid_spec=pltpu.PrefetchScalarGridSpec(
                num_scalar_prefetch=0,
                grid=grid,
                in_specs=[
                    pl.BlockSpec((tm, tk), lambda n, m, k: (m, k)),
                    pl.BlockSpec((tn, tk), lambda n, m, k: (n, k)),
                ],
                out_specs=pl.BlockSpec((tm, tn), lambda n, m, k: (m, n)),
                scratch_shapes=[pltpu.VMEM((tm, tn), jnp.float32)],
            ),
            compiler_params=pltpu.CompilerParams(
                dimension_semantics=("parallel", "parallel", "arbitrary"),
                vmem_limit_bytes=vmem_limit,
            ),
            cost_estimate=cost,
        )(x2d, w)

    return out2d.reshape(*lead, N)


if __name__ == "__main__":
    # Small, deterministic synthetic setup consistent with the module:
    #   shared embedding table (full_vocab=160, emb_dim=32), vocab_size=128
    #   input x of shape (batch=2, seq=8, emb_dim=32)
    batch, seq, emb_dim = 2, 8, 32
    full_vocab, vocab_size = 160, 128

    key = jax.random.PRNGKey(0)
    k_x, k_w = jax.random.split(key)
    x = jax.random.normal(k_x, (batch, seq, emb_dim), dtype=jnp.float32)
    embed_weight = jax.random.normal(k_w, (full_vocab, emb_dim), dtype=jnp.float32)

    # Default (bf16-MXU) path.
    out = out_embds_forward(x, embed_weight, vocab_size)
    out = jax.block_until_ready(out)
    assert out.shape == (batch, seq, vocab_size)
    assert out.dtype == x.dtype

    # Reference with matching numerics (bf16 inputs, f32 accumulation).
    ref_bf16 = lax.dot_general(
        x.reshape(-1, emb_dim).astype(jnp.bfloat16),
        embed_weight[:vocab_size].astype(jnp.bfloat16),
        dimension_numbers=(((1,), (1,)), ((), ())),
        preferred_element_type=jnp.float32,
    ).reshape(batch, seq, vocab_size)
    assert jnp.allclose(out, ref_bf16, atol=1e-2, rtol=1e-2)

    # Exact f32 reference: the precision="f32" path must match tightly, and the
    # bf16 path must stay within bf16 rounding of it.
    ref_f32 = jnp.matmul(x, embed_weight[:vocab_size].T)
    out_f32 = out_embds_forward(x, embed_weight, vocab_size, precision="f32")
    out_f32 = jax.block_until_ready(out_f32)
    assert jnp.allclose(out_f32, ref_f32, atol=1e-4, rtol=1e-4)
    assert jnp.allclose(out, ref_f32, atol=0.5, rtol=0.1)

    print("KERNEL_OK")
</pallas_src>

<mosaic_0001>
module attributes {stable_mosaic.version = 11 : i64} {
  func.func @_out_embds_kernel(%arg0: i32, %arg1: i32, %arg2: memref<16x32xbf16, #tpu.memory_space<vmem>>, %arg3: memref<128x32xbf16, #tpu.memory_space<vmem>>, %arg4: memref<16x128xf32, #tpu.memory_space<vmem>>) attributes {dimension_semantics = [#tpu.dimension_semantics<parallel>, #tpu.dimension_semantics<parallel>], iteration_bounds = array<i64: 1, 1>, scalar_prefetch = 0 : i64, scratch_operands = 0 : i64, tpu.core_type = #tpu.core_type<tc>, window_params = [{transform_indices = @transform_0, window_bounds = array<i64: 16, 32>}, {transform_indices = @transform_1, window_bounds = array<i64: 128, 32>}, {transform_indices = @transform_2, window_bounds = array<i64: 16, 128>}]} {
    %c0 = arith.constant 0 : index
    %c0_0 = arith.constant 0 : index
    %0 = vector.load %arg2[%c0, %c0_0] : memref<16x32xbf16, #tpu.memory_space<vmem>>, vector<16x32xbf16>
    %c0_1 = arith.constant 0 : index
    %c0_2 = arith.constant 0 : index
    %1 = vector.load %arg3[%c0_1, %c0_2] : memref<128x32xbf16, #tpu.memory_space<vmem>>, vector<128x32xbf16>
    %cst = arith.constant dense<0.000000e+00> : vector<16x128xf32>
    %2 = tpu.matmul %0, %1, %cst {dimension_numbers = #tpu.dot_dimension_numbers<[1], [1], [0], [0], [0, 0, 1, 0], [], []>} : vector<16x32xbf16>, vector<128x32xbf16>, vector<16x128xf32> -> vector<16x128xf32>
    %c0_3 = arith.constant 0 : index
    %c0_4 = arith.constant 0 : index
    %3 = vector.load %arg4[%c0_3, %c0_4] : memref<16x128xf32, #tpu.memory_space<vmem>>, vector<16x128xf32>
    tpu.vector_store %arg4[%c0_3, %c0_4], %2 {strides = array<i32>} : memref<16x128xf32, #tpu.memory_space<vmem>>, vector<16x128xf32>,
    return
  }
  func.func @transform_0(%arg0: i32, %arg1: i32) -> (i32, i32) {
    %c0_i32 = arith.constant 0 : i32
    %c0_i32_0 = arith.constant 0 : i32
    return %arg1, %c0_i32 : i32, i32
  }
  func.func @transform_1(%arg0: i32, %arg1: i32) -> (i32, i32) {
    %c0_i32 = arith.constant 0 : i32
    %c0_i32_0 = arith.constant 0 : i32
    return %arg0, %c0_i32 : i32, i32
  }
  func.func @transform_2(%arg0: i32, %arg1: i32) -> (i32, i32) {
    %c0_i32 = arith.constant 0 : i32
    return %arg1, %arg0 : i32, i32
  }
}

</mosaic_0001>

<llo_original>
// kernel: out_embds_forward.1
$region0: #{out_embds_forward.1}
  #allocation0 [shape = 'u32[]', space=smem, size = 0x4, offset = 0x4, fixed_abs, tag = 'smem constant byte address 0x4 - core index']
  #allocation1 [shape = 'u32[144,128]{1,0:T(1,128)}', space=vmem, size = 0x12000, scoped, tag = 'internal scratch']
  %s0 = inlined_call_operand.vmem [shape: bf16[16,32], index: 0, kind: input, shape index: {}]
  %s1 = inlined_call_operand.vmem [shape: bf16[160,32], index: 1, kind: input, shape index: {}]
  %s2 = inlined_call_operand.hbm [shape: f32[16,128], index: 2, kind: output, shape index: {}]
  %s3 = sld [smem:[#allocation0]]
  $region18: #{out_embds_forward.1} parent=0
    _
  %s5 = ssub.s32 1, %s3
  %s6 = scalar_select 0, %s5, %s3
  $region1: #{out_embds_forward.1} parent=0
    #allocation2 [shape = 'u8[8192]{0}', space=vmem, size = 0x2000, scoped, tag = 'output window, operand 0, single buffered']
    #allocation3 [shape = 's32[1]{0}', space=sflag, size = 0x4, scoped, tag = 'scoped memory for out_embds_forward.1']
    %7 = vsyncpa [#allocation3], 0
    // Predicated region
    $region2: #{out_embds_forward.1} parent=1 // pred_check
      _
    $region3: #{out_embds_forward.1} parent=1 // pred_check_branch
      %9 = sbr.rel (0) target = $region5
    $region4: #{out_embds_forward.1} parent=1 // pred_region
      _
    $region5: #{out_embds_forward.1} parent=1 // pred_fallthru
      _
    // Predicated region
    $region6: #{out_embds_forward.1} parent=1 // pred_check
      _
    $region7: #{out_embds_forward.1} parent=1 // pred_check_branch
      %11 = sbr.rel (0) target = $region9
    $region8: #{out_embds_forward.1} parent=1 // pred_region
      _
    $region9: #{out_embds_forward.1} parent=1 // pred_fallthru
      _
    %v13 = vld [vmem:[%s0] sm:$0xf]
    %v14 = vld [vmem:[%s0 + $0x4] sm:$0xf]
    %v15 = vld [vmem:[%s1] sm:$0xf]
    %v16 = vld [vmem:[%s1 + $0x4] sm:$0xf]
    %v17 = vld [vmem:[%s1 + $0x8] sm:$0xf]
    %v18 = vld [vmem:[%s1 + $0xc] sm:$0xf]
    %v19 = vld [vmem:[%s1 + $0x10] sm:$0xf]
    %v20 = vld [vmem:[%s1 + $0x14] sm:$0xf]
    %v21 = vld [vmem:[%s1 + $0x18] sm:$0xf]
    %v22 = vld [vmem:[%s1 + $0x1c] sm:$0xf]
    %v23 = vld [vmem:[%s1 + $0x20] sm:$0xf]
    %v24 = vld [vmem:[%s1 + $0x24] sm:$0xf]
    %v25 = vld [vmem:[%s1 + $0x28] sm:$0xf]
    %v26 = vld [vmem:[%s1 + $0x2c] sm:$0xf]
    %v27 = vld [vmem:[%s1 + $0x30] sm:$0xf]
    %v28 = vld [vmem:[%s1 + $0x34] sm:$0xf]
    %v29 = vld [vmem:[%s1 + $0x38] sm:$0xf]
    %v30 = vld [vmem:[%s1 + $0x3c] sm:$0xf]
    %v33 = vunpack.c.l.b16 %v13
    %v34 = vunpack.c.l.b16 %v14
    %v35 = vpack.c.b16 %v34, %v33
    %v52 = vunpack.c.l.b16 %v15
    %v53 = vunpack.c.l.b16 %v16
    %v54 = vunpack.c.l.b16 %v17
    %v55 = vunpack.c.l.b16 %v18
    %v56 = vunpack.c.l.b16 %v19
    %v57 = vunpack.c.l.b16 %v20
    %v58 = vunpack.c.l.b16 %v21
    %v59 = vunpack.c.l.b16 %v22
    %v60 = vunpack.c.l.b16 %v23
    %v61 = vunpack.c.l.b16 %v24
    %v62 = vunpack.c.l.b16 %v25
    %v63 = vunpack.c.l.b16 %v26
    %v64 = vunpack.c.l.b16 %v27
    %v65 = vunpack.c.l.b16 %v28
    %v66 = vunpack.c.l.b16 %v29
    %v67 = vunpack.c.l.b16 %v30
    %v68 = vpack.c.b16 %v53, %v52
    %v69 = vpack.c.b16 %v55, %v54
    %v70 = vpack.c.b16 %v57, %v56
    %v71 = vpack.c.b16 %v59, %v58
    %v72 = vpack.c.b16 %v61, %v60
    %v73 = vpack.c.b16 %v63, %v62
    %v74 = vpack.c.b16 %v65, %v64
    %v75 = vpack.c.b16 %v67, %v66
    %vm76 = vcmask 261120
    %v78 = vsel %vm76, %v35, 0
    %v81 = vsel %vm76, %v68, 0
    %v84 = vsel %vm76, %v69, 0
    %v87 = vsel %vm76, %v70, 0
    %v90 = vsel %vm76, %v71, 0
    %v93 = vsel %vm76, %v72, 0
    %v96 = vsel %vm76, %v73, 0
    %v99 = vsel %vm76, %v74, 0
    %v102 = vsel %vm76, %v75, 0
    %104 = vmatprep.subr.bf16.mxu0 0
    %105 = vmatpush1.bf16.xpose.msra.mxu0 %v102
    %106 = vmatprep.subr.bf16.mxu0 0
    %107 = vmatpush1.bf16.xpose.msra.mxu0 %v99
    %108 = vmatprep.subr.bf16.mxu0 0
    %109 = vmatpush1.bf16.xpose.msra.mxu0 %v96
    %110 = vmatprep.subr.bf16.mxu0 0
    %111 = vmatpush1.bf16.xpose.msra.mxu0 %v93
    %112 = vmatprep.subr.bf16.mxu0 0
    %113 = vmatpush1.bf16.xpose.msra.mxu0 %v90
    %114 = vmatprep.subr.bf16.mxu0 0
    %115 = vmatpush1.bf16.xpose.msra.mxu0 %v87
    %116 = vmatprep.subr.bf16.mxu0 0
    %117 = vmatpush1.bf16.xpose.msra.mxu0 %v84
    %118 = vmatprep.subr.bf16.mxu0 0
    %119 = vmatpush1.bf16.xpose.msra.mxu0 %v81
    %120 = vmatprep.subr.bf16.mxu0 0
    %121 = vmatpush2.bf16.xpose.msra.mxu0 0
    %122 = vmatprep.subr.bf16.mxu0 0
    %123 = vmatpush2.bf16.xpose.msra.mxu0 0
    %124 = vmatprep.subr.bf16.mxu0 0
    %125 = vmatpush2.bf16.xpose.msra.mxu0 0
    %126 = vmatprep.subr.bf16.mxu0 0
    %127 = vmatpush2.bf16.xpose.msra.mxu0 0
    %128 = vmatprep.subr.bf16.mxu0 0
    %129 = vmatpush2.bf16.xpose.msra.mxu0 0
    %130 = vmatprep.subr.bf16.mxu0 0
    %131 = vmatpush2.bf16.xpose.msra.mxu0 0
    %132 = vmatprep.subr.bf16.mxu0 0
    %133 = vmatpush2.bf16.xpose.msra.mxu0 0
    %134 = vmatprep.subr.bf16.mxu0 0
    %135 = vmatpush2.bf16.xpose.msra.mxu0 0
    %136 = vmatprep.mubr.bf16.mxu0 0
    %137 = vmatmul.mubr.bf16.gmra.mxu0 %v78
    %v138 = vpop.f32.mrf.mxu0
    %v139 = vadd.f32 0.0, %v138
    %v140 = vpop.f32.mrf.mxu0
    %v141 = vpop.f32.mrf.mxu0
    %v142 = vadd.f32 0.0, %v141
    %v143 = vpop.f32.mrf.mxu0
    %144 = vdwg.mxu0
    %145 = vst [vmem:[#allocation2] sm:$0xff] %v139
    %146 = vst [vmem:[#allocation2 + $0x8] sm:$0xff] %v142
    // Predicated region
    $region10: #{out_embds_forward.1} parent=1 // pred_check
      _
    $region11: #{out_embds_forward.1} parent=1 // pred_check_branch
      %148 = sbr.rel (0) target = $region13
    $region12: #{out_embds_forward.1} parent=1 // pred_region
      %s150 = ssub.s32 256, 256
      %151 = vsyncadd [#allocation3], %s150
      %s152 = sshll.u32 [#allocation2], 4
      %s153 = int_to_ptr.vmem [resolvable:$true] %s152
      %158 = dma.vmem_to_hbm [thread:$0]  %s153, 256, %s2, [#allocation3], 128, 128, 8
    $region13: #{out_embds_forward.1} parent=1 // pred_fallthru
      _
    // Predicated region
    $region14: #{out_embds_forward.1} parent=1 // pred_check
      _
    $region15: #{out_embds_forward.1} parent=1 // pred_check_branch
      %160 = sbr.rel (0) target = $region17
    $region16: #{out_embds_forward.1} parent=1 // pred_region
      %161 = dma.done [#allocation3], 256
    $region17: #{out_embds_forward.1} parent=1 // pred_fallthru
      _
    %162 = vsyncpa [#allocation3], 1

</llo_original>
